<compile_context>
chip_gen: v5e
topology: v5e:2x2
jax: 0.10.0
libtpu: 0.0.40
codegen_flags: <defaults>
</compile_context>

<pallas_src>
import functools
import math

import jax
import jax.numpy as jnp
from jax import lax
from jax.experimental import pallas as pl
from jax.experimental.pallas import tpu as pltpu


# ----------------------------------------------------------------------------
# Pallas kernel: fused projection matmuls (MXU) + causal temporal conv (VPU),
# temporal shifts realised as static slices of a haloed VMEM work buffer.
# ----------------------------------------------------------------------------
def _spike_convolve_kernel(s_e_ref, s_i_ref, ce_ref, ci_ref, kern_ref,
                           out_ref, work_ref, *, T_syn, sub_no, HALO, T_CHUNK):
    i = pl.program_id(0)
    T_tile = out_ref.shape[1]

    # First tile: no history -> zero halo (matches the zero left-padding the
    # PyTorch module builds before conv1d).
    @pl.when(i == 0)
    def _():
        work_ref[:, :HALO] = jnp.zeros((2 * sub_no, HALO), work_ref.dtype)

    # Projections on the MXU.  S blocks arrive in natural (T_tile, ch) layout;
    # contracting dim 1 of both operands folds the transpose into the matmul
    # (no wrapper-side repack of S).  f32 accumulation.
    dn = (((1,), (1,)), ((), ()))
    in_e = lax.dot_general(ce_ref[...], s_e_ref[...], dn,
                           preferred_element_type=jnp.float32)   # (sub, T_tile)
    in_i = lax.dot_general(ci_ref[...], s_i_ref[...], dn,
                           preferred_element_type=jnp.float32)   # (sub, T_tile)

    # Stash the projections after a 128-lane halo that carries the previous
    # tile's tail (rows 0..sub-1 = excitatory, rows sub.. = inhibitory).
    work_ref[:sub_no, HALO:] = in_e
    work_ref[sub_no:, HALO:] = in_i

    kern = kern_ref[...]                      # (2*sub_no, T_syn) f32, hoisted once

    # Causal convolution along the lane (time) axis.  Tap j is a static slice of
    # the haloed buffer at lane offset (chunk_base - j): one shifted read per tap,
    # no rolls, no per-tap masks — the halo columns supply in[t - j] for t < j.
    # The tile is processed in <=1024-lane chunks so acc stays small in vregs.
    n_chunks = T_tile // T_CHUNK
    for c in range(n_chunks):                 # small static unroll
        base = HALO + c * T_CHUNK
        acc = work_ref[:, base:base + T_CHUNK] * kern[:, 0:1]          # j = 0
        for j in range(1, T_syn):
            acc = acc + work_ref[:, base - j:base - j + T_CHUNK] * kern[:, j:j + 1]
        # Sum excitatory + inhibitory branches -> (sub_no, T_CHUNK), lane-dense store.
        out_ref[:, c * T_CHUNK:(c + 1) * T_CHUNK] = (
            acc[:sub_no] + acc[sub_no:]).astype(out_ref.dtype)

    # Carry this tile's last HALO projection columns into the halo region for
    # the next (sequential) grid step.  Aligned vreg copies.
    work_ref[:, :HALO] = work_ref[:, T_tile:T_tile + HALO]


def spike_convolve_pallas(S_e, S_i, C_syn_e, C_syn_i, kern_e, kern_i, *,
                          t_tile_max=4096, time_major_output=True):
    """S_e:(T,E) S_i:(T,I) C_syn_e:(sub,E) C_syn_i:(sub,I) kern_*:(T_syn,sub).

    Returns (T, sub_no) float32 (module layout) when time_major_output=True,
    otherwise the lane-dense (sub_no, T) layout for fused downstream consumers.
    """
    T_data, E_no = S_e.shape
    _, I_no = S_i.shape
    sub_no = C_syn_e.shape[0]
    T_syn = kern_e.shape[0]
    HALO = 128
    assert 1 <= T_syn <= HALO + 1, "halo region holds only T_syn-1 <= 128 taps"
    assert t_tile_max % 128 == 0 and t_tile_max >= 128

    # Time tiling: big tiles amortize per-grid-step overhead; compute is chunked
    # inside the kernel (T_CHUNK lanes) to bound vreg pressure.
    t_128 = ((T_data + 127) // 128) * 128
    T_tile = min(t_tile_max, t_128)
    n_tiles = -(-T_data // T_tile)
    T_pad = n_tiles * T_tile
    T_CHUNK = math.gcd(T_tile, 1024)          # multiple of 128, divides T_tile

    # bf16 is lossless for {0,1} spikes / binary assignment matrices; the cast is
    # fused with the (cheap) right-pad to a whole number of tiles.
    # TODO(synk): gate the bf16 cast if a model variant uses continuous C_syn.
    pad = T_pad - T_data
    S_e_p = jnp.pad(S_e.astype(jnp.bfloat16), ((0, pad), (0, 0)))
    S_i_p = jnp.pad(S_i.astype(jnp.bfloat16), ((0, pad), (0, 0)))
    C_e = C_syn_e.astype(jnp.bfloat16)
    C_i = C_syn_i.astype(jnp.bfloat16)
    # Synaptic kernels stay float32: (2*sub_no, T_syn), e rows then i rows.
    kern_cat = jnp.concatenate([kern_e.T, kern_i.T], axis=0).astype(jnp.float32)

    kernel = functools.partial(_spike_convolve_kernel, T_syn=T_syn,
                               sub_no=sub_no, HALO=HALO, T_CHUNK=T_CHUNK)

    grid_spec = pltpu.PrefetchScalarGridSpec(
        num_scalar_prefetch=0,
        grid=(n_tiles,),
        in_specs=[
            pl.BlockSpec((T_tile, E_no), lambda i: (i, 0)),      # S_e time-tile
            pl.BlockSpec((T_tile, I_no), lambda i: (i, 0)),      # S_i time-tile
            pl.BlockSpec((sub_no, E_no), lambda i: (0, 0)),      # C_e (resident)
            pl.BlockSpec((sub_no, I_no), lambda i: (0, 0)),      # C_i (resident)
            pl.BlockSpec((2 * sub_no, T_syn), lambda i: (0, 0)), # kernels (resident)
        ],
        out_specs=pl.BlockSpec((sub_no, T_tile), lambda i: (0, i)),
        # Haloed projection buffer: [0:HALO] = previous tile's tail, rest = current.
        scratch_shapes=[pltpu.VMEM((2 * sub_no, HALO + T_tile), jnp.float32)],
    )
    # NOTE: if xprof shows exposed DMA, add pipeline_mode=pl.Buffered(3) to the
    # two S BlockSpecs only (cheap on all generations).

    out_T = pl.pallas_call(
        kernel,
        out_shape=jax.ShapeDtypeStruct((sub_no, T_pad), jnp.float32),
        grid_spec=grid_spec,
        compiler_params=pltpu.CompilerParams(
            # sequential grid: the scratch halo is a tile-to-tile carry
            dimension_semantics=("arbitrary",),
            # explicit limit is load-bearing on v5e (16 MiB default scoped VMEM)
            vmem_limit_bytes=32 * 1024 * 1024,
        ),
    )(S_e_p, S_i_p, C_e, C_i, kern_cat)

    out = out_T[:, :T_data]
    if time_major_output:
        out = out.T            # module layout (T_data, sub_no)
    return out


# ----------------------------------------------------------------------------
# Parameter construction (plain-JAX glue) — mirrors Spike_Convolve.__init__ and
# the in-forward alpha-function synaptic kernel construction.
# ----------------------------------------------------------------------------
def build_params(sub_no, syn_basis_no):
    K_syn = jnp.stack(
        [jnp.full((sub_no, syn_basis_no), 0.02, jnp.float32),
         jnp.full((sub_no, syn_basis_no), -0.02, jnp.float32)], axis=-1)  # (sub, basis, 2)
    tau_syn = jnp.repeat(
        (jnp.arange(syn_basis_no, dtype=jnp.float32) + 1.6)[:, None], 2, axis=1)  # (basis, 2)
    delta_syn = jnp.zeros((sub_no, 2), jnp.float32)                        # (sub, 2)
    return K_syn, tau_syn, delta_syn


def build_syn_kernels(K_syn, tau_syn, delta_syn, T_syn):
    """Returns kern_e, kern_i of shape (T_syn, sub_no)."""
    t = jnp.arange(T_syn, dtype=jnp.float32)
    t_e = jnp.maximum(t[None, :] - delta_syn[:, 0:1], 0.0)   # (sub, T_syn)
    t_i = jnp.maximum(t[None, :] - delta_syn[:, 1:2], 0.0)
    tau_e = jnp.exp(tau_syn[:, 0])                            # (basis,)
    tau_i = jnp.exp(tau_syn[:, 1])
    te_tau = t_e[:, None, :] / tau_e[None, :, None]           # (sub, basis, T_syn)
    ti_tau = t_i[:, None, :] / tau_i[None, :, None]
    part_e = te_tau * jnp.exp(-te_tau)
    part_i = ti_tau * jnp.exp(-ti_tau)
    kern_e = jnp.sum(part_e * K_syn[:, :, 0][:, :, None], axis=1)   # (sub, T_syn)
    kern_i = jnp.sum(part_i * K_syn[:, :, 1][:, :, None], axis=1)
    return kern_e.T, kern_i.T


# ----------------------------------------------------------------------------
# Pure-JAX reference (correctness check).
# ----------------------------------------------------------------------------
def spike_convolve_ref(S_e, S_i, C_syn_e, C_syn_i, kern_e, kern_i):
    T_data = S_e.shape[0]
    in_e = S_e @ C_syn_e.T
    in_i = S_i @ C_syn_i.T
    out = jnp.zeros_like(in_e)
    T_syn = kern_e.shape[0]
    for j in range(T_syn):
        sh_e = jnp.pad(in_e, ((j, 0), (0, 0)))[:T_data]
        sh_i = jnp.pad(in_i, ((j, 0), (0, 0)))[:T_data]
        out = out + sh_e * kern_e[j][None, :] + sh_i * kern_i[j][None, :]
    return out


if __name__ == "__main__":
    # Small shapes consistent with the module; T_data chosen so multiple time
    # tiles (cross-tile halo carry + right padding + inner chunking) are hit.
    sub_no = 4
    E_no = 16
    I_no = 16
    T_syn = 8
    syn_basis_no = 3
    T_data = 300

    key = jax.random.PRNGKey(0)
    k1, k2, k3, k4 = jax.random.split(key, 4)

    # Synapse -> subunit assignment matrices (constructor arguments).
    C_syn_e = jax.random.bernoulli(k1, 0.5, (sub_no, E_no)).astype(jnp.float32)
    C_syn_i = jax.random.bernoulli(k2, 0.5, (sub_no, I_no)).astype(jnp.float32)
    # Spike inputs.
    S_e = jax.random.bernoulli(k3, 0.3, (T_data, E_no)).astype(jnp.float32)
    S_i = jax.random.bernoulli(k4, 0.3, (T_data, I_no)).astype(jnp.float32)

    K_syn, tau_syn, delta_syn = build_params(sub_no, syn_basis_no)
    kern_e, kern_i = build_syn_kernels(K_syn, tau_syn, delta_syn, T_syn)

    ref = spike_convolve_ref(S_e, S_i, C_syn_e, C_syn_i, kern_e, kern_i)

    # Two configs: a 128-wide tile (3 grid steps -> exercises the halo carry and
    # the partial last tile) and the default big tile (single step, chunked conv).
    for tmax in (128, 4096):
        out = spike_convolve_pallas(S_e, S_i, C_syn_e, C_syn_i, kern_e, kern_i,
                                    t_tile_max=tmax)
        out = jax.block_until_ready(out)
        if out.shape != ref.shape:
            raise AssertionError(f"shape mismatch {out.shape} vs {ref.shape}")
        if not jnp.allclose(out, ref, atol=1e-5, rtol=1e-5):
            raise AssertionError(f"Pallas output mismatch (t_tile_max={tmax})")

    print("KERNEL_OK")
</pallas_src>

<mosaic_0001>
module attributes {stable_mosaic.version = 11 : i64} {
  func.func @_spike_convolve_kernel(%arg0: i32, %arg1: memref<128x16xbf16, #tpu.memory_space<vmem>>, %arg2: memref<128x16xbf16, #tpu.memory_space<vmem>>, %arg3: memref<4x16xbf16, #tpu.memory_space<vmem>>, %arg4: memref<4x16xbf16, #tpu.memory_space<vmem>>, %arg5: memref<8x8xf32, #tpu.memory_space<vmem>>, %arg6: memref<4x128xf32, #tpu.memory_space<vmem>>, %arg7: memref<8x256xf32, #tpu.memory_space<vmem>>) attributes {dimension_semantics = [#tpu.dimension_semantics<arbitrary>], iteration_bounds = array<i64: 3>, scalar_prefetch = 0 : i64, scratch_operands = 1 : i64, tpu.core_type = #tpu.core_type<tc>, window_params = [{transform_indices = @transform_0, window_bounds = array<i64: 128, 16>}, {transform_indices = @transform_1, window_bounds = array<i64: 128, 16>}, {pipeline_mode = #tpu.pipeline_mode<synchronous>, transform_indices = @transform_2, window_bounds = array<i64: 4, 16>}, {pipeline_mode = #tpu.pipeline_mode<synchronous>, transform_indices = @transform_3, window_bounds = array<i64: 4, 16>}, {pipeline_mode = #tpu.pipeline_mode<synchronous>, transform_indices = @transform_4, window_bounds = array<i64: 8, 8>}, {transform_indices = @transform_5, window_bounds = array<i64: 4, 128>}]} {
    %c0_i32 = arith.constant 0 : i32
    %0 = arith.cmpi eq, %arg0, %c0_i32 : i32
    %1 = arith.extui %0 : i1 to i32
    %c0_i32_0 = arith.constant 0 : i32
    %2 = arith.cmpi ne, %1, %c0_i32_0 : i32
    scf.if %2 {
      %cst_28 = arith.constant 0.000000e+00 : f32
      %57 = vector.broadcast %cst_28 : f32 to vector<8x128xf32>
      %c0_29 = arith.constant 0 : index
      %c0_30 = arith.constant 0 : index
      %58 = vector.load %arg7[%c0_29, %c0_30] : memref<8x256xf32, #tpu.memory_space<vmem>>, vector<8x128xf32>
      tpu.vector_store %arg7[%c0_29, %c0_30], %57 {strides = array<i32>} : memref<8x256xf32, #tpu.memory_space<vmem>>, vector<8x128xf32>,
    } else {
    }
    %c0 = arith.constant 0 : index
    %c0_1 = arith.constant 0 : index
    %3 = vector.load %arg3[%c0, %c0_1] : memref<4x16xbf16, #tpu.memory_space<vmem>>, vector<4x16xbf16>
    %c0_2 = arith.constant 0 : index
    %c0_3 = arith.constant 0 : index
    %4 = vector.load %arg1[%c0_2, %c0_3] : memref<128x16xbf16, #tpu.memory_space<vmem>>, vector<128x16xbf16>
    %cst = arith.constant dense<0.000000e+00> : vector<4x128xf32>
    %5 = tpu.matmul %3, %4, %cst {dimension_numbers = #tpu.dot_dimension_numbers<[1], [1], [0], [0], [0, 0, 1, 0], [], []>} : vector<4x16xbf16>, vector<128x16xbf16>, vector<4x128xf32> -> vector<4x128xf32>
    %c0_4 = arith.constant 0 : index
    %c0_5 = arith.constant 0 : index
    %6 = vector.load %arg4[%c0_4, %c0_5] : memref<4x16xbf16, #tpu.memory_space<vmem>>, vector<4x16xbf16>
    %c0_6 = arith.constant 0 : index
    %c0_7 = arith.constant 0 : index
    %7 = vector.load %arg2[%c0_6, %c0_7] : memref<128x16xbf16, #tpu.memory_space<vmem>>, vector<128x16xbf16>
    %cst_8 = arith.constant dense<0.000000e+00> : vector<4x128xf32>
    %8 = tpu.matmul %6, %7, %cst_8 {dimension_numbers = #tpu.dot_dimension_numbers<[1], [1], [0], [0], [0, 0, 1, 0], [], []>} : vector<4x16xbf16>, vector<128x16xbf16>, vector<4x128xf32> -> vector<4x128xf32>
    %c0_9 = arith.constant 0 : index
    %c128 = arith.constant 128 : index
    %9 = vector.load %arg7[%c0_9, %c128] : memref<8x256xf32, #tpu.memory_space<vmem>>, vector<4x128xf32>
    tpu.vector_store %arg7[%c0_9, %c128], %5 {strides = array<i32>} : memref<8x256xf32, #tpu.memory_space<vmem>>, vector<4x128xf32>,
    %c4 = arith.constant 4 : index
    %c128_10 = arith.constant 128 : index
    %10 = vector.load %arg7[%c4, %c128_10] : memref<8x256xf32, #tpu.memory_space<vmem>>, vector<4x128xf32>
    tpu.vector_store %arg7[%c4, %c128_10], %8 {strides = array<i32>} : memref<8x256xf32, #tpu.memory_space<vmem>>, vector<4x128xf32>,
    %c0_11 = arith.constant 0 : index
    %c0_12 = arith.constant 0 : index
    %11 = vector.load %arg5[%c0_11, %c0_12] : memref<8x8xf32, #tpu.memory_space<vmem>>, vector<8x8xf32>
    %c0_13 = arith.constant 0 : index
    %c128_14 = arith.constant 128 : index
    %12 = vector.load %arg7[%c0_13, %c128_14] : memref<8x256xf32, #tpu.memory_space<vmem>>, vector<8x128xf32>
    %13 = vector.extract_strided_slice %11 {offsets = [0, 0], sizes = [8, 1], strides = [1, 1]} : vector<8x8xf32> to vector<8x1xf32>
    %14 = vector.broadcast %13 : vector<8x1xf32> to vector<8x128xf32>
    %15 = arith.mulf %12, %14 : vector<8x128xf32>
    %c0_15 = arith.constant 0 : index
    %c127 = arith.constant 127 : index
    %16 = vector.load %arg7[%c0_15, %c127] : memref<8x256xf32, #tpu.memory_space<vmem>>, vector<8x128xf32>
    %17 = vector.extract_strided_slice %11 {offsets = [0, 1], sizes = [8, 1], strides = [1, 1]} : vector<8x8xf32> to vector<8x1xf32>
    %18 = vector.broadcast %17 : vector<8x1xf32> to vector<8x128xf32>
    %19 = arith.mulf %16, %18 : vector<8x128xf32>
    %20 = arith.addf %15, %19 : vector<8x128xf32>
    %c0_16 = arith.constant 0 : index
    %c126 = arith.constant 126 : index
    %21 = vector.load %arg7[%c0_16, %c126] : memref<8x256xf32, #tpu.memory_space<vmem>>, vector<8x128xf32>
    %22 = vector.extract_strided_slice %11 {offsets = [0, 2], sizes = [8, 1], strides = [1, 1]} : vector<8x8xf32> to vector<8x1xf32>
    %23 = vector.broadcast %22 : vector<8x1xf32> to vector<8x128xf32>
    %24 = arith.mulf %21, %23 : vector<8x128xf32>
    %25 = arith.addf %20, %24 : vector<8x128xf32>
    %c0_17 = arith.constant 0 : index
    %c125 = arith.constant 125 : index
    %26 = vector.load %arg7[%c0_17, %c125] : memref<8x256xf32, #tpu.memory_space<vmem>>, vector<8x128xf32>
    %27 = vector.extract_strided_slice %11 {offsets = [0, 3], sizes = [8, 1], strides = [1, 1]} : vector<8x8xf32> to vector<8x1xf32>
    %28 = vector.broadcast %27 : vector<8x1xf32> to vector<8x128xf32>
    %29 = arith.mulf %26, %28 : vector<8x128xf32>
    %30 = arith.addf %25, %29 : vector<8x128xf32>
    %c0_18 = arith.constant 0 : index
    %c124 = arith.constant 124 : index
    %31 = vector.load %arg7[%c0_18, %c124] : memref<8x256xf32, #tpu.memory_space<vmem>>, vector<8x128xf32>
    %32 = vector.extract_strided_slice %11 {offsets = [0, 4], sizes = [8, 1], strides = [1, 1]} : vector<8x8xf32> to vector<8x1xf32>
    %33 = vector.broadcast %32 : vector<8x1xf32> to vector<8x128xf32>
    %34 = arith.mulf %31, %33 : vector<8x128xf32>
    %35 = arith.addf %30, %34 : vector<8x128xf32>
    %c0_19 = arith.constant 0 : index
    %c123 = arith.constant 123 : index
    %36 = vector.load %arg7[%c0_19, %c123] : memref<8x256xf32, #tpu.memory_space<vmem>>, vector<8x128xf32>
    %37 = vector.extract_strided_slice %11 {offsets = [0, 5], sizes = [8, 1], strides = [1, 1]} : vector<8x8xf32> to vector<8x1xf32>
    %38 = vector.broadcast %37 : vector<8x1xf32> to vector<8x128xf32>
    %39 = arith.mulf %36, %38 : vector<8x128xf32>
    %40 = arith.addf %35, %39 : vector<8x128xf32>
    %c0_20 = arith.constant 0 : index
    %c122 = arith.constant 122 : index
    %41 = vector.load %arg7[%c0_20, %c122] : memref<8x256xf32, #tpu.memory_space<vmem>>, vector<8x128xf32>
    %42 = vector.extract_strided_slice %11 {offsets = [0, 6], sizes = [8, 1], strides = [1, 1]} : vector<8x8xf32> to vector<8x1xf32>
    %43 = vector.broadcast %42 : vector<8x1xf32> to vector<8x128xf32>
    %44 = arith.mulf %41, %43 : vector<8x128xf32>
    %45 = arith.addf %40, %44 : vector<8x128xf32>
    %c0_21 = arith.constant 0 : index
    %c121 = arith.constant 121 : index
    %46 = vector.load %arg7[%c0_21, %c121] : memref<8x256xf32, #tpu.memory_space<vmem>>, vector<8x128xf32>
    %47 = vector.extract_strided_slice %11 {offsets = [0, 7], sizes = [8, 1], strides = [1, 1]} : vector<8x8xf32> to vector<8x1xf32>
    %48 = vector.broadcast %47 : vector<8x1xf32> to vector<8x128xf32>
    %49 = arith.mulf %46, %48 : vector<8x128xf32>
    %50 = arith.addf %45, %49 : vector<8x128xf32>
    %51 = vector.extract_strided_slice %50 {offsets = [0, 0], sizes = [4, 128], strides = [1, 1]} : vector<8x128xf32> to vector<4x128xf32>
    %52 = vector.extract_strided_slice %50 {offsets = [4, 0], sizes = [4, 128], strides = [1, 1]} : vector<8x128xf32> to vector<4x128xf32>
    %53 = arith.addf %51, %52 : vector<4x128xf32>
    %c0_22 = arith.constant 0 : index
    %c0_23 = arith.constant 0 : index
    %54 = vector.load %arg6[%c0_22, %c0_23] : memref<4x128xf32, #tpu.memory_space<vmem>>, vector<4x128xf32>
    tpu.vector_store %arg6[%c0_22, %c0_23], %53 {strides = array<i32>} : memref<4x128xf32, #tpu.memory_space<vmem>>, vector<4x128xf32>,
    %c0_24 = arith.constant 0 : index
    %c128_25 = arith.constant 128 : index
    %55 = vector.load %arg7[%c0_24, %c128_25] : memref<8x256xf32, #tpu.memory_space<vmem>>, vector<8x128xf32>
    %c0_26 = arith.constant 0 : index
    %c0_27 = arith.constant 0 : index
    %56 = vector.load %arg7[%c0_26, %c0_27] : memref<8x256xf32, #tpu.memory_space<vmem>>, vector<8x128xf32>
    tpu.vector_store %arg7[%c0_26, %c0_27], %55 {strides = array<i32>} : memref<8x256xf32, #tpu.memory_space<vmem>>, vector<8x128xf32>,
    return
  }
  func.func @transform_0(%arg0: i32) -> (i32, i32) {
    %c0_i32 = arith.constant 0 : i32
    %c0_i32_0 = arith.constant 0 : i32
    return %arg0, %c0_i32 : i32, i32
  }
  func.func @transform_1(%arg0: i32) -> (i32, i32) {
    %c0_i32 = arith.constant 0 : i32
    %c0_i32_0 = arith.constant 0 : i32
    return %arg0, %c0_i32 : i32, i32
  }
  func.func @transform_2(%arg0: i32) -> (i32, i32) {
    %c0_i32 = arith.constant 0 : i32
    %c0_i32_0 = arith.constant 0 : i32
    %c0_i32_1 = arith.constant 0 : i32
    return %c0_i32, %c0_i32_0 : i32, i32
  }
  func.func @transform_3(%arg0: i32) -> (i32, i32) {
    %c0_i32 = arith.constant 0 : i32
    %c0_i32_0 = arith.constant 0 : i32
    %c0_i32_1 = arith.constant 0 : i32
    return %c0_i32, %c0_i32_0 : i32, i32
  }
  func.func @transform_4(%arg0: i32) -> (i32, i32) {
    %c0_i32 = arith.constant 0 : i32
    %c0_i32_0 = arith.constant 0 : i32
    %c0_i32_1 = arith.constant 0 : i32
    return %c0_i32, %c0_i32_0 : i32, i32
  }
  func.func @transform_5(%arg0: i32) -> (i32, i32) {
    %c0_i32 = arith.constant 0 : i32
    %c0_i32_0 = arith.constant 0 : i32
    return %c0_i32, %arg0 : i32, i32
  }
}

</mosaic_0001>

<llo_original>
// kernel: tpu_custom_call.1
$region0: #{tpu_custom_call.1}
  #allocation0 [shape = 'u32[]', space=smem, size = 0x4, offset = 0x4, fixed_abs, tag = 'smem constant byte address 0x4 - core index']
  #allocation1 [shape = 'u32[72,128]{1,0:T(1,128)}', space=vmem, size = 0x9000, scoped, tag = 'internal scratch']
  #allocation2 [shape = 'f32[8,256]{1,0:T(8,128)}', space=vmem, size = 0x2000, scoped, tag = 'scratch operand']
  %s0 = inlined_call_operand.vmem [shape: bf16[384,16], index: 0, kind: input, shape index: {}]
  %s1 = inlined_call_operand.vmem [shape: bf16[384,16], index: 1, kind: input, shape index: {}]
  %s2 = inlined_call_operand.vmem [shape: bf16[4,16], index: 2, kind: input, shape index: {}]
  %s3 = inlined_call_operand.vmem [shape: bf16[4,16], index: 3, kind: input, shape index: {}]
  %s4 = inlined_call_operand.vmem [shape: f32[8,8], index: 4, kind: input, shape index: {}]
  %s5 = inlined_call_operand.hbm [shape: f32[4,384], index: 5, kind: output, shape index: {}]
  %s6 = sld [smem:[#allocation0]]
  $region57: #{tpu_custom_call.1} parent=0
    _
  %s8 = ssub.s32 1, %s6
  %s9 = scalar_select 0, %s8, %s6
  $region1: #{tpu_custom_call.1} parent=0
    #allocation3 [shape = 'u8[4096]{0}', space=vmem, size = 0x1000, scoped, tag = 'output window, operand 0']
    #allocation4 [shape = 's32[2]{0}', space=sflag, size = 0x8, scoped, tag = 'scoped memory for tpu_custom_call.1']
    %10 = vsyncpa [#allocation4], 0
    %s11 = scalar_lea.sflag [#allocation4], 1
    %12 = vsyncpa %s11, 0
    loop: start=0, step=1, limit=5
    $region2: #{tpu_custom_call.1} parent=1 // loop_pre_header
      _
    $region3: #{tpu_custom_call.1} parent=1 // loop_header
      %s14 = sphi 0, %s18
      %p15 = scmp.ge.s32.totalorder %s14, 5
      %s24 = sphi 0, %s26
      %s27 = sphi 0, %s24
      %s28 = sphi 0, %s27
      %s44 = sphi 0, %s28
      %s50 = sphi 0, %s52
      %s53 = sphi 0, %s50
      %s54 = sphi 0, %s53
      %s70 = sphi 0, %s54
      %s74 = sphi 0, %s74
      %s76 = sphi 0, %s74
      %s77 = sphi 0, %s76
      %s91 = sphi 0, %s77
      %s95 = sphi 0, %s95
      %s97 = sphi 0, %s95
      %s98 = sphi 0, %s97
      %s112 = sphi 0, %s98
      %s116 = sphi 0, %s116
      %s118 = sphi 0, %s116
      %s119 = sphi 0, %s118
      %s133 = sphi 0, %s119
      %s139 = sphi 0, %s141
      %s142 = sphi 0, %s139
      %s143 = sphi 0, %s142
      %s159 = sphi 0, %s143
    $region4: #{tpu_custom_call.1} parent=1 // loop_header_branch
      %17 = sbr.rel (%p15) target = $region8
    $region5: #{tpu_custom_call.1} parent=1 // loop_body
      %s19 = ssub.s32 %s14, 1
      %s20 = ssub.s32 %s14, 2
      %s21 = sadd.s32 %s14, 1
      %s22 = ssub.s32 %s14, %s21
      %p23 = scmp.eq.s32.totalorder %s22, 0
      %s25 = sadd.s32 %s24, 1
      %s26 = scalar_select %p23, %s24, %s25
      %p29 = pneg %p23
      %p30 = scmp.eq.s32.totalorder %s14, 2
      %p31 = por %p29, %p30
      %p32 = scmp.ne.s32.totalorder %s24, %s27
      %p33 = scmp.eq.s32.totalorder %s14, 0
      %p34 = por %p32, %p33
      %p35 = scmp.ne.s32.totalorder %s24, %s27
      %p36 = scmp.eq.s32.totalorder %s19, 2
      %p37 = por %p35, %p36
      %p38 = scmp.ne.s32.totalorder %s27, %s28
      %p39 = scmp.eq.s32.totalorder %s19, 0
      %p40 = por %p38, %p39
      %p41 = scmp.ne.s32.totalorder %s27, %s28
      %p42 = scmp.eq.s32.totalorder %s20, 2
      %p43 = por %p41, %p42
      %p45 = scmp.ne.s32.totalorder %s28, %s44
      %p46 = scmp.eq.s32.totalorder %s20, 0
      %p47 = por %p45, %p46
      %s48 = ssub.s32 %s14, %s21
      %p49 = scmp.eq.s32.totalorder %s48, 0
      %s51 = sadd.s32 %s50, 1
      %s52 = scalar_select %p49, %s50, %s51
      %p55 = pneg %p49
      %p56 = scmp.eq.s32.totalorder %s14, 2
      %p57 = por %p55, %p56
      %p58 = scmp.ne.s32.totalorder %s50, %s53
      %p59 = scmp.eq.s32.totalorder %s14, 0
      %p60 = por %p58, %p59
      %p61 = scmp.ne.s32.totalorder %s50, %s53
      %p62 = scmp.eq.s32.totalorder %s19, 2
      %p63 = por %p61, %p62
      %p64 = scmp.ne.s32.totalorder %s53, %s54
      %p65 = scmp.eq.s32.totalorder %s19, 0
      %p66 = por %p64, %p65
      %p67 = scmp.ne.s32.totalorder %s53, %s54
      %p68 = scmp.eq.s32.totalorder %s20, 2
      %p69 = por %p67, %p68
      %p71 = scmp.ne.s32.totalorder %s54, %s70
      %p72 = scmp.eq.s32.totalorder %s20, 0
      %p73 = por %p71, %p72
      %s75 = sadd.s32 %s74, 1
      %p78 = scmp.eq.s32.totalorder %s14, 2
      %p79 = scmp.ne.s32.totalorder %s74, %s76
      %p80 = scmp.eq.s32.totalorder %s14, 0
      %p81 = por %p79, %p80
      %p82 = scmp.ne.s32.totalorder %s74, %s76
      %p83 = scmp.eq.s32.totalorder %s19, 2
      %p84 = por %p82, %p83
      %p85 = scmp.ne.s32.totalorder %s76, %s77
      %p86 = scmp.eq.s32.totalorder %s19, 0
      %p87 = por %p85, %p86
      %p88 = scmp.ne.s32.totalorder %s76, %s77
      %p89 = scmp.eq.s32.totalorder %s20, 2
      %p90 = por %p88, %p89
      %p92 = scmp.ne.s32.totalorder %s77, %s91
      %p93 = scmp.eq.s32.totalorder %s20, 0
      %p94 = por %p92, %p93
      %s96 = sadd.s32 %s95, 1
      %p99 = scmp.eq.s32.totalorder %s14, 2
      %p100 = scmp.ne.s32.totalorder %s95, %s97
      %p101 = scmp.eq.s32.totalorder %s14, 0
      %p102 = por %p100, %p101
      %p103 = scmp.ne.s32.totalorder %s95, %s97
      %p104 = scmp.eq.s32.totalorder %s19, 2
      %p105 = por %p103, %p104
      %p106 = scmp.ne.s32.totalorder %s97, %s98
      %p107 = scmp.eq.s32.totalorder %s19, 0
      %p108 = por %p106, %p107
      %p109 = scmp.ne.s32.totalorder %s97, %s98
      %p110 = scmp.eq.s32.totalorder %s20, 2
      %p111 = por %p109, %p110
      %p113 = scmp.ne.s32.totalorder %s98, %s112
      %p114 = scmp.eq.s32.totalorder %s20, 0
      %p115 = por %p113, %p114
      %s117 = sadd.s32 %s116, 1
      %p120 = scmp.eq.s32.totalorder %s14, 2
      %p121 = scmp.ne.s32.totalorder %s116, %s118
      %p122 = scmp.eq.s32.totalorder %s14, 0
      %p123 = por %p121, %p122
      %p124 = scmp.ne.s32.totalorder %s116, %s118
      %p125 = scmp.eq.s32.totalorder %s19, 2
      %p126 = por %p124, %p125
      %p127 = scmp.ne.s32.totalorder %s118, %s119
      %p128 = scmp.eq.s32.totalorder %s19, 0
      %p129 = por %p127, %p128
      %p130 = scmp.ne.s32.totalorder %s118, %s119
      %p131 = scmp.eq.s32.totalorder %s20, 2
      %p132 = por %p130, %p131
      %p134 = scmp.ne.s32.totalorder %s119, %s133
      %p135 = scmp.eq.s32.totalorder %s20, 0
      %p136 = por %p134, %p135
      %s137 = ssub.s32 %s14, %s21
      %p138 = scmp.eq.s32.totalorder %s137, 0
      %s140 = sadd.s32 %s139, 1
      %s141 = scalar_select %p138, %s139, %s140
      %p144 = pneg %p138
      %p145 = scmp.eq.s32.totalorder %s14, 2
      %p146 = por %p144, %p145
      %p147 = scmp.ne.s32.totalorder %s139, %s142
      %p148 = scmp.eq.s32.totalorder %s14, 0
      %p149 = por %p147, %p148
      %p150 = scmp.ne.s32.totalorder %s139, %s142
      %p151 = scmp.eq.s32.totalorder %s19, 2
      %p152 = por %p150, %p151
      %p153 = scmp.ne.s32.totalorder %s142, %s143
      %p154 = scmp.eq.s32.totalorder %s19, 0
      %p155 = por %p153, %p154
      %p156 = scmp.ne.s32.totalorder %s142, %s143
      %p157 = scmp.eq.s32.totalorder %s20, 2
      %p158 = por %p156, %p157
      %p160 = scmp.ne.s32.totalorder %s143, %s159
      %p161 = scmp.eq.s32.totalorder %s20, 0
      %p162 = por %p160, %p161
      %p163 = scmp.le.s32.totalorder 1, %s14
      %p164 = scmp.lt.s32.totalorder %s14, 4
      %p165 = pnand %p163, %p164
      %p166 = pneg %p165
      // Predicated region
      $region9: #{tpu_custom_call.1} parent=5 // pred_check
        _
      $region10: #{tpu_custom_call.1} parent=5 // pred_check_branch
        %168 = sbr.rel (%p165) target = $region12
      $region11: #{tpu_custom_call.1} parent=5 // pred_region
        %s169 = ssub.s32 %s14, 1
        // Predicated region
        $region13: #{tpu_custom_call.1} parent=11 // pred_check
          %p170 = pneg %p87
        $region14: #{tpu_custom_call.1} parent=11 // pred_check_branch
          %172 = sbr.rel (%p170) target = $region16
        $region15: #{tpu_custom_call.1} parent=11 // pred_region
          _
        $region16: #{tpu_custom_call.1} parent=11 // pred_fallthru
          _
        // Predicated region
        $region17: #{tpu_custom_call.1} parent=11 // pred_check
          %p173 = pneg %p108
        $region18: #{tpu_custom_call.1} parent=11 // pred_check_branch
          %175 = sbr.rel (%p173) target = $region20
        $region19: #{tpu_custom_call.1} parent=11 // pred_region
          _
        $region20: #{tpu_custom_call.1} parent=11 // pred_fallthru
          _
        // Predicated region
        $region21: #{tpu_custom_call.1} parent=11 // pred_check
          %p176 = pneg %p129
        $region22: #{tpu_custom_call.1} parent=11 // pred_check_branch
          %178 = sbr.rel (%p176) target = $region24
        $region23: #{tpu_custom_call.1} parent=11 // pred_region
          _
        $region24: #{tpu_custom_call.1} parent=11 // pred_fallthru
          _
      $region12: #{tpu_custom_call.1} parent=5 // pred_fallthru
        _
      %p179 = scmp.lt.s32.totalorder %s14, 3
      // Predicated region
      $region25: #{tpu_custom_call.1} parent=5 // pred_check
        %p180 = pneg %p179
      $region26: #{tpu_custom_call.1} parent=5 // pred_check_branch
        %182 = sbr.rel (%p180) target = $region28
      $region27: #{tpu_custom_call.1} parent=5 // pred_region
        // Predicated region
        $region29: #{tpu_custom_call.1} parent=27 // pred_check
          %p183 = pneg %p34
        $region30: #{tpu_custom_call.1} parent=27 // pred_check_branch
          %185 = sbr.rel (%p183) target = $region32
        $region31: #{tpu_custom_call.1} parent=27 // pred_region
          %s186 = smul.u32 16, %s14
          %p187 = scmp.lt.s32.totalorder %s186, 47
          %s188 = scalar_select %p187, %s186, 47
          %s189 = smul.addr %s188, 4
          %s190 = scalar_lea.vmem %s0, %s189
          %s191 = smul.u32 16, %s14
        $region32: #{tpu_custom_call.1} parent=27 // pred_fallthru
          _
        // Predicated region
        $region33: #{tpu_custom_call.1} parent=27 // pred_check
          %p192 = pneg %p60
        $region34: #{tpu_custom_call.1} parent=27 // pred_check_branch
          %194 = sbr.rel (%p192) target = $region36
        $region35: #{tpu_custom_call.1} parent=27 // pred_region
          %s195 = smul.u32 16, %s14
          %p196 = scmp.lt.s32.totalorder %s195, 47
          %s197 = scalar_select %p196, %s195, 47
          %s198 = smul.addr %s197, 4
          %s199 = scalar_lea.vmem %s1, %s198
          %s200 = smul.u32 16, %s14
        $region36: #{tpu_custom_call.1} parent=27 // pred_fallthru
          _
      $region28: #{tpu_custom_call.1} parent=5 // pred_fallthru
        _
      %p201 = scmp.le.s32.totalorder 1, %s14
      %p202 = scmp.lt.s32.totalorder %s14, 4
      %p203 = pnand %p201, %p202
      %p204 = pneg %p203
      // Predicated region
      $region37: #{tpu_custom_call.1} parent=5 // pred_check
        _
      $region38: #{tpu_custom_call.1} parent=5 // pred_check_branch
        %206 = sbr.rel (%p203) target = $region40
      $region39: #{tpu_custom_call.1} parent=5 // pred_region
        %s207 = ssub.s32 %s14, 1
        %s208 = smul.u32 16, %s19
        %p209 = scmp.lt.s32.totalorder %s208, 47
        %s210 = scalar_select %p209, %s208, 47
        %s211 = smul.addr %s210, 4
        %s212 = scalar_lea.vmem %s0, %s211
        %p213 = pneg %p40
        %p214 = pneg %p37
        %s215 = smul.u32 16, %s19
        %p216 = scmp.lt.s32.totalorder %s215, 47
        %s217 = scalar_select %p216, %s215, 47
        %s218 = smul.addr %s217, 4
        %s219 = scalar_lea.vmem %s1, %s218
        %p220 = pneg %p66
        %p221 = pneg %p63
        %p222 = pneg %p87
        %p223 = pneg %p84
        %p224 = pneg %p108
        %p225 = pneg %p105
        %p226 = pneg %p129
        %p227 = pneg %p126
        %p228 = pneg %p155
        %p229 = pneg %p152
        %s230 = sand.u32 %s142, 1
        %s231 = scalar_lea.sflag [#allocation4], %s230
        %s232 = sand.u32 %s142, 1
        %s233 = smul.addr %s232, 4
        %s234 = scalar_lea.vmem [#allocation3], %s233
        %s235 = smul.u32 16, %s19
        %p236 = scmp.lt.s32.totalorder %s235, 47
        %s237 = scalar_select %p236, %s235, 47
        %s238 = smul.addr %s237, 4
        %s239 = scalar_lea.vmem %s0, %s238
        %s240 = smul.u32 16, %s19
        %s241 = smul.u32 16, %s19
        %p242 = scmp.lt.s32.totalorder %s241, 47
        %s243 = scalar_select %p242, %s241, 47
        %s244 = smul.addr %s243, 4
        %s245 = scalar_lea.vmem %s1, %s244
        %s246 = smul.u32 16, %s19
        %p247 = scmp.eq.s32.totalorder %s19, 0
        // Predicated region
        $region41: #{tpu_custom_call.1} parent=39 // pred_check
          %p248 = pneg %p247
        $region42: #{tpu_custom_call.1} parent=39 // pred_check_branch
          %250 = sbr.rel (%p248) target = $region44
        $region43: #{tpu_custom_call.1} parent=39 // pred_region
          %251 = vst [vmem:[#allocation2] sm:$0xff] 0.0
        $region44: #{tpu_custom_call.1} parent=39 // pred_fallthru
          _
        %v252 = vld [vmem:[%s2] sm:$0x3]
        %v253 = vld [vmem:[%s239] sm:$0xf]
        %v254 = vld [vmem:[%s239 + $0x4] sm:$0xf]
        %v255 = vld [vmem:[%s239 + $0x8] sm:$0xf]
        %v256 = vld [vmem:[%s239 + $0xc] sm:$0xf]
        %v257 = vld [vmem:[%s239 + $0x10] sm:$0xf]
        %v258 = vld [vmem:[%s239 + $0x14] sm:$0xf]
        %v259 = vld [vmem:[%s239 + $0x18] sm:$0xf]
        %v260 = vld [vmem:[%s239 + $0x1c] sm:$0xf]
        %v261 = vld [vmem:[%s239 + $0x20] sm:$0xf]
        %v262 = vld [vmem:[%s239 + $0x24] sm:$0xf]
        %v263 = vld [vmem:[%s239 + $0x28] sm:$0xf]
        %v264 = vld [vmem:[%s239 + $0x2c] sm:$0xf]
        %v265 = vld [vmem:[%s239 + $0x30] sm:$0xf]
        %v266 = vld [vmem:[%s239 + $0x34] sm:$0xf]
        %v267 = vld [vmem:[%s239 + $0x38] sm:$0xf]
        %v268 = vld [vmem:[%s239 + $0x3c] sm:$0xf]
        %v285 = vunpack.c.l.b16 %v253
        %v286 = vunpack.c.l.b16 %v254
        %v287 = vunpack.c.l.b16 %v255
        %v288 = vunpack.c.l.b16 %v256
        %v289 = vunpack.c.l.b16 %v257
        %v290 = vunpack.c.l.b16 %v258
        %v291 = vunpack.c.l.b16 %v259
        %v292 = vunpack.c.l.b16 %v260
        %v293 = vunpack.c.l.b16 %v261
        %v294 = vunpack.c.l.b16 %v262
        %v295 = vunpack.c.l.b16 %v263
        %v296 = vunpack.c.l.b16 %v264
        %v297 = vunpack.c.l.b16 %v265
        %v298 = vunpack.c.l.b16 %v266
        %v299 = vunpack.c.l.b16 %v267
        %v300 = vunpack.c.l.b16 %v268
        %v301 = vpack.c.b16 %v286, %v285
        %v302 = vpack.c.b16 %v288, %v287
        %v303 = vpack.c.b16 %v290, %v289
        %v304 = vpack.c.b16 %v292, %v291
        %v305 = vpack.c.b16 %v294, %v293
        %v306 = vpack.c.b16 %v296, %v295
        %v307 = vpack.c.b16 %v298, %v297
        %v308 = vpack.c.b16 %v300, %v299
        %vm309 = vcmask 130048
        %v311 = vsel %vm309, %v252, 0
        %v314 = vsel %vm309, %v301, 0
        %v317 = vsel %vm309, %v302, 0
        %v320 = vsel %vm309, %v303, 0
        %v323 = vsel %vm309, %v304, 0
        %v326 = vsel %vm309, %v305, 0
        %v329 = vsel %vm309, %v306, 0
        %v332 = vsel %vm309, %v307, 0
        %v335 = vsel %vm309, %v308, 0
        %337 = vmatpush.bf16.xpose.msra.mxu0 %v335
        %338 = vmatpush.bf16.xpose.msra.mxu0 %v332
        %339 = vmatpush.bf16.xpose.msra.mxu0 %v329
        %340 = vmatpush.bf16.xpose.msra.mxu0 %v326
        %341 = vmatpush.bf16.xpose.msra.mxu0 %v323
        %342 = vmatpush.bf16.xpose.msra.mxu0 %v320
        %343 = vmatpush.bf16.xpose.msra.mxu0 %v317
        %344 = vmatpush.bf16.xpose.msra.mxu0 %v314
        %345 = vmatmul.bf16.gmra.mxu0 %v311
        %v346 = vpop.f32.mrf.mxu0
        %v347 = vadd.f32 0.0, %v346
        %v348 = vpop.f32.mrf.mxu0
        %349 = vdwg.mxu0
        %v350 = vld [vmem:[%s3] sm:$0x3]
        %v351 = vld [vmem:[%s245] sm:$0xf]
        %v352 = vld [vmem:[%s245 + $0x4] sm:$0xf]
        %v353 = vld [vmem:[%s245 + $0x8] sm:$0xf]
        %v354 = vld [vmem:[%s245 + $0xc] sm:$0xf]
        %v355 = vld [vmem:[%s245 + $0x10] sm:$0xf]
        %v356 = vld [vmem:[%s245 + $0x14] sm:$0xf]
        %v357 = vld [vmem:[%s245 + $0x18] sm:$0xf]
        %v358 = vld [vmem:[%s245 + $0x1c] sm:$0xf]
        %v359 = vld [vmem:[%s245 + $0x20] sm:$0xf]
        %v360 = vld [vmem:[%s245 + $0x24] sm:$0xf]
        %v361 = vld [vmem:[%s245 + $0x28] sm:$0xf]
        %v362 = vld [vmem:[%s245 + $0x2c] sm:$0xf]
        %v363 = vld [vmem:[%s245 + $0x30] sm:$0xf]
        %v364 = vld [vmem:[%s245 + $0x34] sm:$0xf]
        %v365 = vld [vmem:[%s245 + $0x38] sm:$0xf]
        %v366 = vld [vmem:[%s245 + $0x3c] sm:$0xf]
        %v383 = vunpack.c.l.b16 %v351
        %v384 = vunpack.c.l.b16 %v352
        %v385 = vunpack.c.l.b16 %v353
        %v386 = vunpack.c.l.b16 %v354
        %v387 = vunpack.c.l.b16 %v355
        %v388 = vunpack.c.l.b16 %v356
        %v389 = vunpack.c.l.b16 %v357
        %v390 = vunpack.c.l.b16 %v358
        %v391 = vunpack.c.l.b16 %v359
        %v392 = vunpack.c.l.b16 %v360
        %v393 = vunpack.c.l.b16 %v361
        %v394 = vunpack.c.l.b16 %v362
        %v395 = vunpack.c.l.b16 %v363
        %v396 = vunpack.c.l.b16 %v364
        %v397 = vunpack.c.l.b16 %v365
        %v398 = vunpack.c.l.b16 %v366
        %v399 = vpack.c.b16 %v384, %v383
        %v400 = vpack.c.b16 %v386, %v385
        %v401 = vpack.c.b16 %v388, %v387
        %v402 = vpack.c.b16 %v390, %v389
        %v403 = vpack.c.b16 %v392, %v391
        %v404 = vpack.c.b16 %v394, %v393
        %v405 = vpack.c.b16 %v396, %v395
        %v406 = vpack.c.b16 %v398, %v397
        %v408 = vsel %vm309, %v350, 0
        %v411 = vsel %vm309, %v399, 0
        %v414 = vsel %vm309, %v400, 0
        %v417 = vsel %vm309, %v401, 0
        %v420 = vsel %vm309, %v402, 0
        %v423 = vsel %vm309, %v403, 0
        %v426 = vsel %vm309, %v404, 0
        %v429 = vsel %vm309, %v405, 0
        %v432 = vsel %vm309, %v406, 0
        %434 = vmatpush.bf16.xpose.msra.mxu0 %v432
        %435 = vmatpush.bf16.xpose.msra.mxu0 %v429
        %436 = vmatpush.bf16.xpose.msra.mxu0 %v426
        %437 = vmatpush.bf16.xpose.msra.mxu0 %v423
        %438 = vmatpush.bf16.xpose.msra.mxu0 %v420
        %439 = vmatpush.bf16.xpose.msra.mxu0 %v417
        %440 = vmatpush.bf16.xpose.msra.mxu0 %v414
        %441 = vmatpush.bf16.xpose.msra.mxu0 %v411
        %442 = vmatmul.bf16.gmra.mxu0 %v408
        %v443 = vpop.f32.mrf.mxu0
        %v444 = vadd.f32 0.0, %v443
        %v445 = vpop.f32.mrf.mxu0
        %446 = vdwg.mxu0
        %447 = vst [vmem:[#allocation2 + $0x8] sm:$0xf] %v347
        %v449 = vrot.slane %v444, 4
        %451 = vst [vmem:[#allocation2 + $0x8] sm:$0xf0] %v449
        %v452 = vld [vmem:[%s4] sm:$0xff]
        %v453 = vld [vmem:[#allocation2 + $0x8] sm:$0xff]
        %455 = vset.pattern.permute.xlu0 0
        %456 = vperm.xlu0 %455, %v452
        %v457 = vpop.permute.xlu0 %456
        %v459 = vmul.f32 %v453, %v457
        %v460 = vld [vmem:[#allocation2] sm:$0xff]
        %461 = vset.pattern.permute.xlu0 1
        %462 = vperm.xlu0 %461, %v452
        %v463 = vpop.permute.xlu0 %462
        %v465 = vmul.f32 %v460, %v463
        %v466 = vmul.f32 %v453, %v463
        %469 = vrot.lane.b32.xlu0 %v465, 1
        %v470 = vpop.permute.xlu0 %469
        %471 = vrot.lane.b32.xlu0 %v466, 1
        %v472 = vpop.permute.xlu0 %471
        %vm473 = vcmask 7168
        %v474 = vsel %vm473, %v470, %v472
        %v476 = vadd.f32 %v459, %v474
        %477 = vset.pattern.permute.xlu0 2
        %478 = vperm.xlu0 %477, %v452
        %v479 = vpop.permute.xlu0 %478
        %v481 = vmul.f32 %v460, %v479
        %v482 = vmul.f32 %v453, %v479
        %485 = vrot.lane.b32.xlu0 %v481, 2
        %v486 = vpop.permute.xlu0 %485
        %487 = vrot.lane.b32.xlu0 %v482, 2
        %v488 = vpop.permute.xlu0 %487
        %vm489 = vcmask 15360
        %v490 = vsel %vm489, %v486, %v488
        %v492 = vadd.f32 %v476, %v490
        %493 = vset.pattern.permute.xlu0 3
        %494 = vperm.xlu0 %493, %v452
        %v495 = vpop.permute.xlu0 %494
        %v497 = vmul.f32 %v460, %v495
        %v498 = vmul.f32 %v453, %v495
        %501 = vrot.lane.b32.xlu0 %v497, 3
        %v502 = vpop.permute.xlu0 %501
        %503 = vrot.lane.b32.xlu0 %v498, 3
        %v504 = vpop.permute.xlu0 %503
        %vm505 = vcmask 23552
        %v506 = vsel %vm505, %v502, %v504
        %v508 = vadd.f32 %v492, %v506
        %509 = vset.pattern.permute.xlu0 4
        %510 = vperm.xlu0 %509, %v452
        %v511 = vpop.permute.xlu0 %510
        %v513 = vmul.f32 %v460, %v511
        %v514 = vmul.f32 %v453, %v511
        %517 = vrot.lane.b32.xlu0 %v513, 4
        %v518 = vpop.permute.xlu0 %517
        %519 = vrot.lane.b32.xlu0 %v514, 4
        %v520 = vpop.permute.xlu0 %519
        %vm521 = vcmask 31744
        %v522 = vsel %vm521, %v518, %v520
        %v524 = vadd.f32 %v508, %v522
        %525 = vset.pattern.permute.xlu0 5
        %526 = vperm.xlu0 %525, %v452
        %v527 = vpop.permute.xlu0 %526
        %v529 = vmul.f32 %v460, %v527
        %v530 = vmul.f32 %v453, %v527
        %533 = vrot.lane.b32.xlu0 %v529, 5
        %v534 = vpop.permute.xlu0 %533
        %535 = vrot.lane.b32.xlu0 %v530, 5
        %v536 = vpop.permute.xlu0 %535
        %vm537 = vcmask 39936
        %v538 = vsel %vm537, %v534, %v536
        %v540 = vadd.f32 %v524, %v538
        %541 = vset.pattern.permute.xlu0 6
        %542 = vperm.xlu0 %541, %v452
        %v543 = vpop.permute.xlu0 %542
        %v545 = vmul.f32 %v460, %v543
        %v546 = vmul.f32 %v453, %v543
        %549 = vrot.lane.b32.xlu0 %v545, 6
        %v550 = vpop.permute.xlu0 %549
        %551 = vrot.lane.b32.xlu0 %v546, 6
        %v552 = vpop.permute.xlu0 %551
        %vm553 = vcmask 48128
        %v554 = vsel %vm553, %v550, %v552
        %v556 = vadd.f32 %v540, %v554
        %557 = vset.pattern.permute.xlu0 7
        %558 = vperm.xlu0 %557, %v452
        %v559 = vpop.permute.xlu0 %558
        %v561 = vmul.f32 %v460, %v559
        %v562 = vmul.f32 %v453, %v559
        %565 = vrot.lane.b32.xlu0 %v561, 7
        %v566 = vpop.permute.xlu0 %565
        %567 = vrot.lane.b32.xlu0 %v562, 7
        %v568 = vpop.permute.xlu0 %567
        %vm569 = vcmask 56320
        %v570 = vsel %vm569, %v566, %v568
        %v572 = vadd.f32 %v556, %v570
        %v574 = vrot.slane %v572, 4
        %v576 = vadd.f32 %v572, %v574
        %577 = vst [vmem:[%s234] sm:$0xf] %v576
        %v578 = vld [vmem:[#allocation2 + $0x8] sm:$0xff]
        %579 = vst [vmem:[#allocation2] sm:$0xff] %v578
        %s580 = sand.u32 %s142, 1
        %s581 = scalar_lea.sflag [#allocation4], %s580
        %s582 = sand.u32 %s142, 1
        %s583 = smul.addr %s582, 4
        %s584 = scalar_lea.vmem [#allocation3], %s583
        // Predicated region
        $region45: #{tpu_custom_call.1} parent=39 // pred_check
          %p585 = pneg %p152
        $region46: #{tpu_custom_call.1} parent=39 // pred_check_branch
          %587 = sbr.rel (%p585) target = $region48
        $region47: #{tpu_custom_call.1} parent=39 // pred_region
          %589 = vsyncadd %s581, 0
          %s590 = smul.addr %s19, 4
          %s591 = scalar_lea.hbm %s5, %s590
          %s593 = sshll.u32 %s584, 4
          %s594 = int_to_ptr.vmem [resolvable:$true] %s593
          %s595 = sshll.u32 %s591, 4
          %s596 = int_to_ptr.hbm [resolvable:$true] %s595
          %598 = dma.vmem_to_hbm [thread:$0]  %s594, 64, %s596, %s581
        $region48: #{tpu_custom_call.1} parent=39 // pred_fallthru
          _
      $region40: #{tpu_custom_call.1} parent=5 // pred_fallthru
        _
      %p599 = scmp.le.s32.totalorder 2, %s14
      // Predicated region
      $region49: #{tpu_custom_call.1} parent=5 // pred_check
        %p600 = pneg %p599
      $region50: #{tpu_custom_call.1} parent=5 // pred_check_branch
        %602 = sbr.rel (%p600) target = $region52
      $region51: #{tpu_custom_call.1} parent=5 // pred_region
        %s603 = ssub.s32 %s14, 2
        // Predicated region
        $region53: #{tpu_custom_call.1} parent=51 // pred_check
          %p604 = pneg %p158
        $region54: #{tpu_custom_call.1} parent=51 // pred_check_branch
          %606 = sbr.rel (%p604) target = $region56
        $region55: #{tpu_custom_call.1} parent=51 // pred_region
          %s607 = sand.u32 %s143, 1
          %s608 = scalar_lea.sflag [#allocation4], %s607
          %s609 = sand.u32 %s143, 1
          %s610 = smul.addr %s609, 4
          %s611 = scalar_lea.vmem [#allocation3], %s610
          %613 = dma.done %s608, 64
        $region56: #{tpu_custom_call.1} parent=51 // pred_fallthru
          _
      $region52: #{tpu_custom_call.1} parent=5 // pred_fallthru
        _
    $region6: #{tpu_custom_call.1} parent=1 // loop_footer
      %s18 = sadd.s32 1, %s14
    $region7: #{tpu_custom_call.1} parent=1 // loop_footer_branch
      %13 = sbr.rel target = $region3
    $region8: #{tpu_custom_call.1} parent=1 // loop_exit
      _
    %614 = vsyncpa [#allocation4], 1
    %s615 = scalar_lea.sflag [#allocation4], 1
    %616 = vsyncpa %s615, 1

</llo_original>
